<compile_context>
chip_gen: v6e
topology: v6e:2x2x1
jax: 0.10.0
libtpu: 0.0.40
codegen_flags: <defaults>
</compile_context>

<pallas_src>
import jax
import jax.numpy as jnp
from jax.experimental import pallas as pl
from jax.experimental.pallas import tpu as pltpu


LANE = 128                      # last-dim blocks must be multiples of 128 lanes
SUBLANE = 8                     # second-to-last dim multiple for f32/bf16 blocks
TILE_B_MAX = 1024               # upper cap on batch tile rows
VMEM_BUDGET = 12 * 1024 * 1024  # stay under the default scoped-VMEM limit on v5e


def _round_up(n, m):
    return (n + m - 1) // m * m


def _erf(x):
    # Abramowitz & Stegun 7.1.26 rational approximation (|err| < 1.5e-7):
    # keeps parity with PyTorch's default (exact/erf) F.gelu. The division is
    # done on the EUP via pl.reciprocal(approx=True) instead of a VALU divide.
    a1, a2, a3, a4, a5 = 0.254829592, -0.284496736, 1.421413741, -1.453152027, 1.061405429
    p = 0.3275911
    sign = jnp.where(x >= 0.0, 1.0, -1.0)
    ax = jnp.abs(x)
    t = pl.reciprocal(1.0 + p * ax, approx=True)
    poly = ((((a5 * t + a4) * t + a3) * t + a2) * t + a1) * t
    y = 1.0 - poly * jnp.exp(-ax * ax)
    return sign * y


def _gelu_exact(x):
    # PyTorch F.gelu default (erf-based, not tanh approximation).
    return 0.5 * x * (1.0 + _erf(x * 0.70710678118654752440))


def _sigmoid(x):
    return pl.reciprocal(1.0 + jnp.exp(-x), approx=True)


def mlp_kernel(x_ref, w1_ref, b1_ref, w2_ref, b2_ref, w3_ref, b3_ref, o_ref):
    # hidden1: Linear(d, d) + GELU        (dropout1 = identity in eval mode)
    h = jnp.dot(x_ref[...], w1_ref[...], preferred_element_type=jnp.float32)
    h = _gelu_exact(h + b1_ref[...])

    # hidden2: Linear(d, hidden_d) + GELU (dropout2 = identity in eval mode)
    h = jnp.dot(h.astype(jnp.bfloat16), w2_ref[...], preferred_element_type=jnp.float32)
    h = _gelu_exact(h + b2_ref[...])

    # out: Linear(hidden_d, out_dim) + sigmoid
    h = jnp.dot(h.astype(jnp.bfloat16), w3_ref[...], preferred_element_type=jnp.float32)
    o_ref[...] = _sigmoid(h + b3_ref[...]).astype(o_ref.dtype)


def _pick_tile_b(B, d_p, h_p, o_p):
    """Largest multiple-of-8 batch tile (<= TILE_B_MAX) that fits the VMEM budget."""
    resident = 2 * (d_p * d_p + d_p * h_p + h_p * o_p)          # bf16 weights
    resident += 4 * (d_p + h_p + o_p)                           # f32 biases
    # per-row cost: 2x double-buffered bf16 input + 2x double-buffered f32 out
    # + f32 intermediates (d_p and h_p wide) as internal scratch headroom.
    per_row = 2 * (2 * d_p) + 2 * (4 * o_p) + 4 * (d_p + h_p)
    avail = max(VMEM_BUDGET - resident, per_row * SUBLANE)
    tile = max(SUBLANE, (avail // per_row) // SUBLANE * SUBLANE)
    tile = min(tile, TILE_B_MAX, _round_up(B, SUBLANE))
    return int(tile)


def mlp_forward(x, params):
    """x: any shape (B, ...) -> flattened to (B, d). Returns (B, out_dim) float32."""
    w1, b1, w2, b2, w3, b3 = params
    B = x.shape[0]
    d = w1.shape[0]
    hidden_d = w2.shape[1]
    out_dim = w3.shape[1]

    x2d = x.reshape(B, -1)
    assert x2d.shape[1] == d, "flattened feature size must equal d"

    # Lane-dense padding of every feature dim to a multiple of 128.
    d_p = _round_up(d, LANE)
    h_p = _round_up(hidden_d, LANE)
    o_p = _round_up(out_dim, LANE)

    # bf16 matmul operands; biases (and accumulation) stay f32.
    x_p = jnp.pad(x2d.astype(jnp.bfloat16), ((0, 0), (0, d_p - d)))
    w1_p = jnp.pad(w1.astype(jnp.bfloat16), ((0, d_p - d), (0, d_p - d)))
    b1_p = jnp.pad(b1.astype(jnp.float32), ((0, 0), (0, d_p - d)))
    w2_p = jnp.pad(w2.astype(jnp.bfloat16), ((0, d_p - d), (0, h_p - hidden_d)))
    b2_p = jnp.pad(b2.astype(jnp.float32), ((0, 0), (0, h_p - hidden_d)))
    w3_p = jnp.pad(w3.astype(jnp.bfloat16), ((0, h_p - hidden_d), (0, o_p - out_dim)))
    b3_p = jnp.pad(b3.astype(jnp.float32), ((0, 0), (0, o_p - out_dim)))

    # Batch tiling: grid over batch rows (auto-pipelined, double-buffered DMA).
    tile_b = _pick_tile_b(B, d_p, h_p, o_p)
    B_p = _round_up(B, tile_b)
    x_p = jnp.pad(x_p, ((0, B_p - B), (0, 0)))
    grid = (B_p // tile_b,)

    out_p = pl.pallas_call(
        mlp_kernel,
        out_shape=jax.ShapeDtypeStruct((B_p, o_p), jnp.float32),
        grid=grid,
        in_specs=[
            pl.BlockSpec((tile_b, d_p), lambda i: (i, 0)),  # x: tiled over batch
            pl.BlockSpec((d_p, d_p), lambda i: (0, 0)),     # W1 resident
            pl.BlockSpec((1, d_p), lambda i: (0, 0)),       # b1 resident
            pl.BlockSpec((d_p, h_p), lambda i: (0, 0)),     # W2 resident
            pl.BlockSpec((1, h_p), lambda i: (0, 0)),       # b2 resident
            pl.BlockSpec((h_p, o_p), lambda i: (0, 0)),     # W3 resident
            pl.BlockSpec((1, o_p), lambda i: (0, 0)),       # b3 resident
        ],
        out_specs=pl.BlockSpec((tile_b, o_p), lambda i: (i, 0)),
        compiler_params=pltpu.CompilerParams(
            dimension_semantics=("parallel",),  # megacore sharding on v7x; no-op on v5e/v6e
        ),
    )(x_p, w1_p, b1_p, w2_p, b2_p, w3_p, b3_p)

    return out_p[:B, :out_dim]


def init_params(key, d, hidden_d, out_dim):
    """Deterministic init mimicking nn.Linear default U(-1/sqrt(fan_in), +1/sqrt(fan_in)).

    Weights are stored pre-transposed as (in, out); biases as (1, out).
    """
    ks = jax.random.split(key, 6)

    def linear(kw, kb, fan_in, fan_out):
        bound = 1.0 / jnp.sqrt(fan_in)
        w = jax.random.uniform(kw, (fan_in, fan_out), jnp.float32, -bound, bound)
        b = jax.random.uniform(kb, (1, fan_out), jnp.float32, -bound, bound)
        return w, b

    w1, b1 = linear(ks[0], ks[1], d, d)
    w2, b2 = linear(ks[2], ks[3], d, hidden_d)
    w3, b3 = linear(ks[4], ks[5], hidden_d, out_dim)
    return (w1, b1, w2, b2, w3, b3)


def reference_forward(x, params):
    # Pure-JAX f32 reference of the same eval-mode forward pass (exact-erf GELU).
    w1, b1, w2, b2, w3, b3 = params
    h = x.reshape(x.shape[0], -1).astype(jnp.float32)
    h = jax.nn.gelu(h @ w1 + b1, approximate=False)
    h = jax.nn.gelu(h @ w2 + b2, approximate=False)
    h = jax.nn.sigmoid(h @ w3 + b3)
    return h


if __name__ == "__main__":
    key = jax.random.PRNGKey(0)
    k_x, k_p = jax.random.split(key)

    # Input like an image batch that forward() flattens: (B, C, H, W) -> (B, d)
    B, C, H, W = 2, 4, 4, 8          # d = C*H*W = 128
    d, hidden_d, out_dim = C * H * W, 64, 32

    x = jax.random.normal(k_x, (B, C, H, W), jnp.float32)
    params = init_params(k_p, d, hidden_d, out_dim)

    fwd = jax.jit(mlp_forward)
    out = jax.block_until_ready(fwd(x, params))

    ref = reference_forward(x, params)
    assert out.shape == (B, out_dim)
    # bf16 matmul operands + approx EUP reciprocals => ~1e-2-level drift vs f32 ref.
    err = float(jnp.max(jnp.abs(out - ref)))
    assert err < 3e-2, f"mismatch vs pure-JAX reference (max abs err {err})"

    print("KERNEL_OK")
</pallas_src>

<mosaic_0001>
module attributes {stable_mosaic.version = 11 : i64} {
  func.func @mlp_kernel(%arg0: i32, %arg1: memref<8x128xbf16, #tpu.memory_space<vmem>>, %arg2: memref<128x128xbf16, #tpu.memory_space<vmem>>, %arg3: memref<1x128xf32, #tpu.memory_space<vmem>>, %arg4: memref<128x128xbf16, #tpu.memory_space<vmem>>, %arg5: memref<1x128xf32, #tpu.memory_space<vmem>>, %arg6: memref<128x128xbf16, #tpu.memory_space<vmem>>, %arg7: memref<1x128xf32, #tpu.memory_space<vmem>>, %arg8: memref<8x128xf32, #tpu.memory_space<vmem>>) attributes {dimension_semantics = [#tpu.dimension_semantics<parallel>], iteration_bounds = array<i64: 1>, scalar_prefetch = 0 : i64, scratch_operands = 0 : i64, tpu.core_type = #tpu.core_type<tc>, window_params = [{transform_indices = @transform_0, window_bounds = array<i64: 8, 128>}, {pipeline_mode = #tpu.pipeline_mode<synchronous>, transform_indices = @transform_1, window_bounds = array<i64: 128, 128>}, {pipeline_mode = #tpu.pipeline_mode<synchronous>, transform_indices = @transform_2, window_bounds = array<i64: 1, 128>}, {pipeline_mode = #tpu.pipeline_mode<synchronous>, transform_indices = @transform_3, window_bounds = array<i64: 128, 128>}, {pipeline_mode = #tpu.pipeline_mode<synchronous>, transform_indices = @transform_4, window_bounds = array<i64: 1, 128>}, {pipeline_mode = #tpu.pipeline_mode<synchronous>, transform_indices = @transform_5, window_bounds = array<i64: 128, 128>}, {pipeline_mode = #tpu.pipeline_mode<synchronous>, transform_indices = @transform_6, window_bounds = array<i64: 1, 128>}, {transform_indices = @transform_7, window_bounds = array<i64: 8, 128>}]} {
    %c0 = arith.constant 0 : index
    %c0_0 = arith.constant 0 : index
    %0 = vector.load %arg1[%c0, %c0_0] : memref<8x128xbf16, #tpu.memory_space<vmem>>, vector<8x128xbf16>
    %c0_1 = arith.constant 0 : index
    %c0_2 = arith.constant 0 : index
    %1 = vector.load %arg2[%c0_1, %c0_2] : memref<128x128xbf16, #tpu.memory_space<vmem>>, vector<128x128xbf16>
    %cst = arith.constant dense<0.000000e+00> : vector<8x128xf32>
    %2 = tpu.matmul %0, %1, %cst {dimension_numbers = #tpu.dot_dimension_numbers<[1], [0], [0], [1], [0, 0, 1, 1], [], []>} : vector<8x128xbf16>, vector<128x128xbf16>, vector<8x128xf32> -> vector<8x128xf32>
    %c0_3 = arith.constant 0 : index
    %c0_4 = arith.constant 0 : index
    %3 = vector.load %arg3[%c0_3, %c0_4] : memref<1x128xf32, #tpu.memory_space<vmem>>, vector<1x128xf32>
    %4 = vector.broadcast %3 : vector<1x128xf32> to vector<8x128xf32>
    %5 = arith.addf %2, %4 : vector<8x128xf32>
    %cst_5 = arith.constant 5.000000e-01 : f32
    %6 = vector.broadcast %cst_5 : f32 to vector<8x128xf32>
    %7 = arith.mulf %6, %5 : vector<8x128xf32>
    %cst_6 = arith.constant 0.707106769 : f32
    %8 = vector.broadcast %cst_6 : f32 to vector<8x128xf32>
    %9 = arith.mulf %5, %8 : vector<8x128xf32>
    %cst_7 = arith.constant 0.000000e+00 : f32
    %10 = vector.broadcast %cst_7 : f32 to vector<8x128xf32>
    %11 = arith.cmpf oge, %9, %10 : vector<8x128xf32>
    %cst_8 = arith.constant 1.000000e+00 : f32
    %cst_9 = arith.constant -1.000000e+00 : f32
    %12 = vector.broadcast %cst_8 : f32 to vector<8x128xf32>
    %13 = vector.broadcast %cst_9 : f32 to vector<8x128xf32>
    %14 = arith.select %11, %12, %13 : vector<8x128xi1>, vector<8x128xf32>
    %15 = math.absf %9 : vector<8x128xf32>
    %cst_10 = arith.constant 0.327591091 : f32
    %16 = vector.broadcast %cst_10 : f32 to vector<8x128xf32>
    %17 = arith.mulf %16, %15 : vector<8x128xf32>
    %cst_11 = arith.constant 1.000000e+00 : f32
    %18 = vector.broadcast %cst_11 : f32 to vector<8x128xf32>
    %19 = arith.addf %18, %17 : vector<8x128xf32>
    %20 = tpu.reciprocal %19 {approx = true} : vector<8x128xf32> -> vector<8x128xf32>
    %cst_12 = arith.constant 1.06140542 : f32
    %21 = vector.broadcast %cst_12 : f32 to vector<8x128xf32>
    %22 = arith.mulf %21, %20 : vector<8x128xf32>
    %cst_13 = arith.constant -1.45315206 : f32
    %23 = vector.broadcast %cst_13 : f32 to vector<8x128xf32>
    %24 = arith.addf %22, %23 : vector<8x128xf32>
    %25 = arith.mulf %24, %20 : vector<8x128xf32>
    %cst_14 = arith.constant 1.42141378 : f32
    %26 = vector.broadcast %cst_14 : f32 to vector<8x128xf32>
    %27 = arith.addf %25, %26 : vector<8x128xf32>
    %28 = arith.mulf %27, %20 : vector<8x128xf32>
    %cst_15 = arith.constant -0.284496725 : f32
    %29 = vector.broadcast %cst_15 : f32 to vector<8x128xf32>
    %30 = arith.addf %28, %29 : vector<8x128xf32>
    %31 = arith.mulf %30, %20 : vector<8x128xf32>
    %cst_16 = arith.constant 0.254829586 : f32
    %32 = vector.broadcast %cst_16 : f32 to vector<8x128xf32>
    %33 = arith.addf %31, %32 : vector<8x128xf32>
    %34 = arith.mulf %33, %20 : vector<8x128xf32>
    %cst_17 = arith.constant 0.000000e+00 : f32
    %35 = vector.broadcast %cst_17 : f32 to vector<8x128xf32>
    %36 = arith.subf %35, %15 : vector<8x128xf32>
    %37 = arith.mulf %36, %15 : vector<8x128xf32>
    %38 = math.exp %37 : vector<8x128xf32>
    %39 = arith.mulf %34, %38 : vector<8x128xf32>
    %cst_18 = arith.constant 1.000000e+00 : f32
    %40 = vector.broadcast %cst_18 : f32 to vector<8x128xf32>
    %41 = arith.subf %40, %39 : vector<8x128xf32>
    %42 = arith.mulf %14, %41 : vector<8x128xf32>
    %cst_19 = arith.constant 1.000000e+00 : f32
    %43 = vector.broadcast %cst_19 : f32 to vector<8x128xf32>
    %44 = arith.addf %43, %42 : vector<8x128xf32>
    %45 = arith.mulf %7, %44 : vector<8x128xf32>
    %46 = arith.truncf %45 : vector<8x128xf32> to vector<8x128xbf16>
    %c0_20 = arith.constant 0 : index
    %c0_21 = arith.constant 0 : index
    %47 = vector.load %arg4[%c0_20, %c0_21] : memref<128x128xbf16, #tpu.memory_space<vmem>>, vector<128x128xbf16>
    %cst_22 = arith.constant dense<0.000000e+00> : vector<8x128xf32>
    %48 = tpu.matmul %46, %47, %cst_22 {dimension_numbers = #tpu.dot_dimension_numbers<[1], [0], [0], [1], [0, 0, 1, 1], [], []>} : vector<8x128xbf16>, vector<128x128xbf16>, vector<8x128xf32> -> vector<8x128xf32>
    %c0_23 = arith.constant 0 : index
    %c0_24 = arith.constant 0 : index
    %49 = vector.load %arg5[%c0_23, %c0_24] : memref<1x128xf32, #tpu.memory_space<vmem>>, vector<1x128xf32>
    %50 = vector.broadcast %49 : vector<1x128xf32> to vector<8x128xf32>
    %51 = arith.addf %48, %50 : vector<8x128xf32>
    %cst_25 = arith.constant 5.000000e-01 : f32
    %52 = vector.broadcast %cst_25 : f32 to vector<8x128xf32>
    %53 = arith.mulf %52, %51 : vector<8x128xf32>
    %cst_26 = arith.constant 0.707106769 : f32
    %54 = vector.broadcast %cst_26 : f32 to vector<8x128xf32>
    %55 = arith.mulf %51, %54 : vector<8x128xf32>
    %cst_27 = arith.constant 0.000000e+00 : f32
    %56 = vector.broadcast %cst_27 : f32 to vector<8x128xf32>
    %57 = arith.cmpf oge, %55, %56 : vector<8x128xf32>
    %cst_28 = arith.constant 1.000000e+00 : f32
    %cst_29 = arith.constant -1.000000e+00 : f32
    %58 = vector.broadcast %cst_28 : f32 to vector<8x128xf32>
    %59 = vector.broadcast %cst_29 : f32 to vector<8x128xf32>
    %60 = arith.select %57, %58, %59 : vector<8x128xi1>, vector<8x128xf32>
    %61 = math.absf %55 : vector<8x128xf32>
    %cst_30 = arith.constant 0.327591091 : f32
    %62 = vector.broadcast %cst_30 : f32 to vector<8x128xf32>
    %63 = arith.mulf %62, %61 : vector<8x128xf32>
    %cst_31 = arith.constant 1.000000e+00 : f32
    %64 = vector.broadcast %cst_31 : f32 to vector<8x128xf32>
    %65 = arith.addf %64, %63 : vector<8x128xf32>
    %66 = tpu.reciprocal %65 {approx = true} : vector<8x128xf32> -> vector<8x128xf32>
    %cst_32 = arith.constant 1.06140542 : f32
    %67 = vector.broadcast %cst_32 : f32 to vector<8x128xf32>
    %68 = arith.mulf %67, %66 : vector<8x128xf32>
    %cst_33 = arith.constant -1.45315206 : f32
    %69 = vector.broadcast %cst_33 : f32 to vector<8x128xf32>
    %70 = arith.addf %68, %69 : vector<8x128xf32>
    %71 = arith.mulf %70, %66 : vector<8x128xf32>
    %cst_34 = arith.constant 1.42141378 : f32
    %72 = vector.broadcast %cst_34 : f32 to vector<8x128xf32>
    %73 = arith.addf %71, %72 : vector<8x128xf32>
    %74 = arith.mulf %73, %66 : vector<8x128xf32>
    %cst_35 = arith.constant -0.284496725 : f32
    %75 = vector.broadcast %cst_35 : f32 to vector<8x128xf32>
    %76 = arith.addf %74, %75 : vector<8x128xf32>
    %77 = arith.mulf %76, %66 : vector<8x128xf32>
    %cst_36 = arith.constant 0.254829586 : f32
    %78 = vector.broadcast %cst_36 : f32 to vector<8x128xf32>
    %79 = arith.addf %77, %78 : vector<8x128xf32>
    %80 = arith.mulf %79, %66 : vector<8x128xf32>
    %cst_37 = arith.constant 0.000000e+00 : f32
    %81 = vector.broadcast %cst_37 : f32 to vector<8x128xf32>
    %82 = arith.subf %81, %61 : vector<8x128xf32>
    %83 = arith.mulf %82, %61 : vector<8x128xf32>
    %84 = math.exp %83 : vector<8x128xf32>
    %85 = arith.mulf %80, %84 : vector<8x128xf32>
    %cst_38 = arith.constant 1.000000e+00 : f32
    %86 = vector.broadcast %cst_38 : f32 to vector<8x128xf32>
    %87 = arith.subf %86, %85 : vector<8x128xf32>
    %88 = arith.mulf %60, %87 : vector<8x128xf32>
    %cst_39 = arith.constant 1.000000e+00 : f32
    %89 = vector.broadcast %cst_39 : f32 to vector<8x128xf32>
    %90 = arith.addf %89, %88 : vector<8x128xf32>
    %91 = arith.mulf %53, %90 : vector<8x128xf32>
    %92 = arith.truncf %91 : vector<8x128xf32> to vector<8x128xbf16>
    %c0_40 = arith.constant 0 : index
    %c0_41 = arith.constant 0 : index
    %93 = vector.load %arg6[%c0_40, %c0_41] : memref<128x128xbf16, #tpu.memory_space<vmem>>, vector<128x128xbf16>
    %cst_42 = arith.constant dense<0.000000e+00> : vector<8x128xf32>
    %94 = tpu.matmul %92, %93, %cst_42 {dimension_numbers = #tpu.dot_dimension_numbers<[1], [0], [0], [1], [0, 0, 1, 1], [], []>} : vector<8x128xbf16>, vector<128x128xbf16>, vector<8x128xf32> -> vector<8x128xf32>
    %c0_43 = arith.constant 0 : index
    %c0_44 = arith.constant 0 : index
    %95 = vector.load %arg7[%c0_43, %c0_44] : memref<1x128xf32, #tpu.memory_space<vmem>>, vector<1x128xf32>
    %96 = vector.broadcast %95 : vector<1x128xf32> to vector<8x128xf32>
    %97 = arith.addf %94, %96 : vector<8x128xf32>
    %cst_45 = arith.constant 0.000000e+00 : f32
    %98 = vector.broadcast %cst_45 : f32 to vector<8x128xf32>
    %99 = arith.subf %98, %97 : vector<8x128xf32>
    %100 = math.exp %99 : vector<8x128xf32>
    %cst_46 = arith.constant 1.000000e+00 : f32
    %101 = vector.broadcast %cst_46 : f32 to vector<8x128xf32>
    %102 = arith.addf %101, %100 : vector<8x128xf32>
    %103 = tpu.reciprocal %102 {approx = true} : vector<8x128xf32> -> vector<8x128xf32>
    %c0_47 = arith.constant 0 : index
    %c0_48 = arith.constant 0 : index
    %104 = vector.load %arg8[%c0_47, %c0_48] : memref<8x128xf32, #tpu.memory_space<vmem>>, vector<8x128xf32>
    tpu.vector_store %arg8[%c0_47, %c0_48], %103 {strides = array<i32>} : memref<8x128xf32, #tpu.memory_space<vmem>>, vector<8x128xf32>,
    return
  }
  func.func @transform_0(%arg0: i32) -> (i32, i32) {
    %c0_i32 = arith.constant 0 : i32
    %c0_i32_0 = arith.constant 0 : i32
    return %arg0, %c0_i32 : i32, i32
  }
  func.func @transform_1(%arg0: i32) -> (i32, i32) {
    %c0_i32 = arith.constant 0 : i32
    %c0_i32_0 = arith.constant 0 : i32
    %c0_i32_1 = arith.constant 0 : i32
    return %c0_i32, %c0_i32_0 : i32, i32
  }
  func.func @transform_2(%arg0: i32) -> (i32, i32) {
    %c0_i32 = arith.constant 0 : i32
    %c0_i32_0 = arith.constant 0 : i32
    %c0_i32_1 = arith.constant 0 : i32
    return %c0_i32, %c0_i32_0 : i32, i32
  }
  func.func @transform_3(%arg0: i32) -> (i32, i32) {
    %c0_i32 = arith.constant 0 : i32
    %c0_i32_0 = arith.constant 0 : i32
    %c0_i32_1 = arith.constant 0 : i32
    return %c0_i32, %c0_i32_0 : i32, i32
  }
  func.func @transform_4(%arg0: i32) -> (i32, i32) {
    %c0_i32 = arith.constant 0 : i32
    %c0_i32_0 = arith.constant 0 : i32
    %c0_i32_1 = arith.constant 0 : i32
    return %c0_i32, %c0_i32_0 : i32, i32
  }
  func.func @transform_5(%arg0: i32) -> (i32, i32) {
    %c0_i32 = arith.constant 0 : i32
    %c0_i32_0 = arith.constant 0 : i32
    %c0_i32_1 = arith.constant 0 : i32
    return %c0_i32, %c0_i32_0 : i32, i32
  }
  func.func @transform_6(%arg0: i32) -> (i32, i32) {
    %c0_i32 = arith.constant 0 : i32
    %c0_i32_0 = arith.constant 0 : i32
    %c0_i32_1 = arith.constant 0 : i32
    return %c0_i32, %c0_i32_0 : i32, i32
  }
  func.func @transform_7(%arg0: i32) -> (i32, i32) {
    %c0_i32 = arith.constant 0 : i32
    %c0_i32_0 = arith.constant 0 : i32
    return %arg0, %c0_i32 : i32, i32
  }
}

</mosaic_0001>

<llo_original>
// kernel: mlp_forward.1
$region0: #{mlp_forward.1}
  #allocation0 [shape = 'u32[]', space=smem, size = 0x4, offset = 0x4, fixed_abs, tag = 'smem constant byte address 0x4 - core index']
  #allocation1 [shape = 'u32[144,128]{1,0:T(1,128)}', space=vmem, size = 0x12000, scoped, tag = 'internal scratch']
  %s0 = inlined_call_operand.vmem [shape: bf16[8,128], index: 0, kind: input, shape index: {}]
  %s1 = inlined_call_operand.vmem [shape: bf16[128,128], index: 1, kind: input, shape index: {}]
  %s2 = inlined_call_operand.vmem [shape: f32[1,128], index: 2, kind: input, shape index: {}]
  %s3 = inlined_call_operand.vmem [shape: bf16[128,128], index: 3, kind: input, shape index: {}]
  %s4 = inlined_call_operand.vmem [shape: f32[1,128], index: 4, kind: input, shape index: {}]
  %s5 = inlined_call_operand.vmem [shape: bf16[128,128], index: 5, kind: input, shape index: {}]
  %s6 = inlined_call_operand.vmem [shape: f32[1,128], index: 6, kind: input, shape index: {}]
  %s7 = inlined_call_operand.vmem [shape: f32[8,128], index: 7, kind: output, shape index: {}]
  %s8 = sld [smem:[#allocation0]]
  $region38: #{mlp_forward.1} parent=0
    _
  %s10 = ssub.s32 1, %s8
  %s11 = scalar_select 0, %s10, %s8
  // Predicated region
  $region2: #{mlp_forward.1} parent=0 // pred_check
    _
  $region3: #{mlp_forward.1} parent=0 // pred_check_branch
    %13 = sbr.rel (0) target = $region5
  $region4: #{mlp_forward.1} parent=0 // pred_region
    _
  $region5: #{mlp_forward.1} parent=0 // pred_fallthru
    _
  // Predicated region
  $region6: #{mlp_forward.1} parent=0 // pred_check
    _
  $region7: #{mlp_forward.1} parent=0 // pred_check_branch
    %15 = sbr.rel (0) target = $region9
  $region8: #{mlp_forward.1} parent=0 // pred_region
    _
  $region9: #{mlp_forward.1} parent=0 // pred_fallthru
    _
  // Predicated region
  $region10: #{mlp_forward.1} parent=0 // pred_check
    _
  $region11: #{mlp_forward.1} parent=0 // pred_check_branch
    %17 = sbr.rel (0) target = $region13
  $region12: #{mlp_forward.1} parent=0 // pred_region
    _
  $region13: #{mlp_forward.1} parent=0 // pred_fallthru
    _
  // Predicated region
  $region14: #{mlp_forward.1} parent=0 // pred_check
    _
  $region15: #{mlp_forward.1} parent=0 // pred_check_branch
    %19 = sbr.rel (0) target = $region17
  $region16: #{mlp_forward.1} parent=0 // pred_region
    _
  $region17: #{mlp_forward.1} parent=0 // pred_fallthru
    _
  // Predicated region
  $region18: #{mlp_forward.1} parent=0 // pred_check
    _
  $region19: #{mlp_forward.1} parent=0 // pred_check_branch
    %21 = sbr.rel (0) target = $region21
  $region20: #{mlp_forward.1} parent=0 // pred_region
    _
  $region21: #{mlp_forward.1} parent=0 // pred_fallthru
    _
  // Predicated region
  $region22: #{mlp_forward.1} parent=0 // pred_check
    _
  $region23: #{mlp_forward.1} parent=0 // pred_check_branch
    %23 = sbr.rel (0) target = $region25
  $region24: #{mlp_forward.1} parent=0 // pred_region
    _
  $region25: #{mlp_forward.1} parent=0 // pred_fallthru
    _
  // Predicated region
  $region26: #{mlp_forward.1} parent=0 // pred_check
    _
  $region27: #{mlp_forward.1} parent=0 // pred_check_branch
    %25 = sbr.rel (0) target = $region29
  $region28: #{mlp_forward.1} parent=0 // pred_region
    _
  $region29: #{mlp_forward.1} parent=0 // pred_fallthru
    _
  %v27 = vld [vmem:[%s0] sm:$0xf]
  %v28 = vld [vmem:[%s1] sm:$0xf]
  %v29 = vld [vmem:[%s1 + $0x4] sm:$0xf]
  %v30 = vld [vmem:[%s1 + $0x8] sm:$0xf]
  %v31 = vld [vmem:[%s1 + $0xc] sm:$0xf]
  %v32 = vld [vmem:[%s1 + $0x10] sm:$0xf]
  %v33 = vld [vmem:[%s1 + $0x14] sm:$0xf]
  %v34 = vld [vmem:[%s1 + $0x18] sm:$0xf]
  %v35 = vld [vmem:[%s1 + $0x1c] sm:$0xf]
  %v36 = vld [vmem:[%s1 + $0x20] sm:$0xf]
  %v37 = vld [vmem:[%s1 + $0x24] sm:$0xf]
  %v38 = vld [vmem:[%s1 + $0x28] sm:$0xf]
  %v39 = vld [vmem:[%s1 + $0x2c] sm:$0xf]
  %v40 = vld [vmem:[%s1 + $0x30] sm:$0xf]
  %v41 = vld [vmem:[%s1 + $0x34] sm:$0xf]
  %v42 = vld [vmem:[%s1 + $0x38] sm:$0xf]
  %v43 = vld [vmem:[%s1 + $0x3c] sm:$0xf]
  %v44 = vld [vmem:[%s2] sm:$0x1]
  %v46 = vlaneseq
  %v47 = vshrl.u32 %v46, 7
  %v48 = vsub.s32 0, %v47
  %v49 = vrot.slane %v44, %v48
  %v67 = vunpack.c.l.b16 %v28
  %v68 = vunpack.c.l.b16 %v29
  %v69 = vunpack.c.l.b16 %v30
  %v70 = vunpack.c.l.b16 %v31
  %v71 = vunpack.c.l.b16 %v32
  %v72 = vunpack.c.l.b16 %v33
  %v73 = vunpack.c.l.b16 %v34
  %v74 = vunpack.c.l.b16 %v35
  %v75 = vunpack.c.l.b16 %v36
  %v76 = vunpack.c.l.b16 %v37
  %v77 = vunpack.c.l.b16 %v38
  %v78 = vunpack.c.l.b16 %v39
  %v79 = vunpack.c.l.b16 %v40
  %v80 = vunpack.c.l.b16 %v41
  %v81 = vunpack.c.l.b16 %v42
  %v82 = vunpack.c.l.b16 %v43
  %v83 = vpack.c.b16 %v68, %v67
  %v84 = vpack.c.b16 %v70, %v69
  %v85 = vpack.c.b16 %v72, %v71
  %v86 = vpack.c.b16 %v74, %v73
  %v87 = vpack.c.b16 %v76, %v75
  %v88 = vpack.c.b16 %v78, %v77
  %v89 = vpack.c.b16 %v80, %v79
  %v90 = vpack.c.b16 %v82, %v81
  %99 = vmatprep.subr.bf16.mxu0 0
  %100 = vmatpush1.bf16.msra.mxu0 %v90
  %101 = vmatprep.subr.bf16.mxu0 0
  %102 = vmatpush1.bf16.msra.mxu0 %v89
  %103 = vmatprep.subr.bf16.mxu0 0
  %104 = vmatpush1.bf16.msra.mxu0 %v88
  %105 = vmatprep.subr.bf16.mxu0 0
  %106 = vmatpush1.bf16.msra.mxu0 %v87
  %107 = vmatprep.subr.bf16.mxu0 0
  %108 = vmatpush1.bf16.msra.mxu0 %v86
  %109 = vmatprep.subr.bf16.mxu0 0
  %110 = vmatpush1.bf16.msra.mxu0 %v85
  %111 = vmatprep.subr.bf16.mxu0 0
  %112 = vmatpush1.bf16.msra.mxu0 %v84
  %113 = vmatprep.subr.bf16.mxu0 0
  %114 = vmatpush1.bf16.msra.mxu0 %v83
  %115 = vmatprep.subr.bf16.mxu0 0
  %116 = vmatpush2.bf16.msra.mxu0 0
  %117 = vmatprep.subr.bf16.mxu0 0
  %118 = vmatpush2.bf16.msra.mxu0 0
  %119 = vmatprep.subr.bf16.mxu0 0
  %120 = vmatpush2.bf16.msra.mxu0 0
  %121 = vmatprep.subr.bf16.mxu0 0
  %122 = vmatpush2.bf16.msra.mxu0 0
  %123 = vmatprep.subr.bf16.mxu0 0
  %124 = vmatpush2.bf16.msra.mxu0 0
  %125 = vmatprep.subr.bf16.mxu0 0
  %126 = vmatpush2.bf16.msra.mxu0 0
  %127 = vmatprep.subr.bf16.mxu0 0
  %128 = vmatpush2.bf16.msra.mxu0 0
  %129 = vmatprep.subr.bf16.mxu0 0
  %130 = vmatpush2.bf16.msra.mxu0 0
  %131 = vmatprep.mubr.bf16.mxu0 0
  %132 = vmatmul.mubr.bf16.gmra.mxu0 %v27
  %v133 = vpop.f32.mrf.mxu0
  %v134 = vadd.f32 %v49, %v133
  %v135 = vpop.f32.mrf.mxu0
  %v136 = vpop.f32.mrf.mxu0
  %v137 = vpop.f32.mrf.mxu0
  %138 = vdwg.mxu0
  %v139 = vmul.f32 %v134, 0.5
  %v140 = vmul.f32 %v134, 0.70710677
  %vm141 = vcmp.ge.f32.partialorder %v140, 0.0
  %v142 = vsel %vm141, 1.0, -1.0
  %v143 = vand.u32 2147483647, %v140
  %v144 = vmul.f32 %v143, 0.3275911
  %v145 = vadd.f32 %v144, 1.0
  %v146 = vrcp.pop %v145
  %v147 = vmul.f32 %v146, 1.0614054
  %v148 = vadd.f32 %v147, -1.4531521
  %v149 = vmul.f32 %v148, %v146
  %v150 = vadd.f32 %v149, 1.4214138
  %v151 = vmul.f32 %v150, %v146
  %v152 = vadd.f32 %v151, -0.28449672
  %v153 = vmul.f32 %v152, %v146
  %v154 = vadd.f32 %v153, 0.2548296
  %v155 = vmul.f32 %v154, %v146
  %v156 = vsub.f32 0.0, %v143
  %v157 = vmul.f32 %v156, %v143
  %v158 = vmul.f32 %v157, 1.442695
  %v159 = vpow.pop %v158
  %v160 = vmul.f32 %v155, %v159
  %v161 = vsub.f32 1.0, %v160
  %v162 = vmul.f32 %v142, %v161
  %v163 = vadd.f32 %v162, 1.0
  %v164 = vmul.f32 %v139, %v163
  %v165 = vpack.c.bf16 %v164, %v164
  %v166 = vld [vmem:[%s3] sm:$0xf]
  %v167 = vld [vmem:[%s3 + $0x4] sm:$0xf]
  %v168 = vld [vmem:[%s3 + $0x8] sm:$0xf]
  %v169 = vld [vmem:[%s3 + $0xc] sm:$0xf]
  %v170 = vld [vmem:[%s3 + $0x10] sm:$0xf]
  %v171 = vld [vmem:[%s3 + $0x14] sm:$0xf]
  %v172 = vld [vmem:[%s3 + $0x18] sm:$0xf]
  %v173 = vld [vmem:[%s3 + $0x1c] sm:$0xf]
  %v174 = vld [vmem:[%s3 + $0x20] sm:$0xf]
  %v175 = vld [vmem:[%s3 + $0x24] sm:$0xf]
  %v176 = vld [vmem:[%s3 + $0x28] sm:$0xf]
  %v177 = vld [vmem:[%s3 + $0x2c] sm:$0xf]
  %v178 = vld [vmem:[%s3 + $0x30] sm:$0xf]
  %v179 = vld [vmem:[%s3 + $0x34] sm:$0xf]
  %v180 = vld [vmem:[%s3 + $0x38] sm:$0xf]
  %v181 = vld [vmem:[%s3 + $0x3c] sm:$0xf]
  %v182 = vld [vmem:[%s4] sm:$0x1]
  %v184 = vlaneseq
  %v185 = vshrl.u32 %v184, 7
  %v186 = vsub.s32 0, %v185
  %v187 = vrot.slane %v182, %v186
  %v205 = vunpack.c.l.b16 %v166
  %v206 = vunpack.c.l.b16 %v167
  %v207 = vunpack.c.l.b16 %v168
  %v208 = vunpack.c.l.b16 %v169
  %v209 = vunpack.c.l.b16 %v170
  %v210 = vunpack.c.l.b16 %v171
  %v211 = vunpack.c.l.b16 %v172
  %v212 = vunpack.c.l.b16 %v173
  %v213 = vunpack.c.l.b16 %v174
  %v214 = vunpack.c.l.b16 %v175
  %v215 = vunpack.c.l.b16 %v176
  %v216 = vunpack.c.l.b16 %v177
  %v217 = vunpack.c.l.b16 %v178
  %v218 = vunpack.c.l.b16 %v179
  %v219 = vunpack.c.l.b16 %v180
  %v220 = vunpack.c.l.b16 %v181
  %v221 = vpack.c.b16 %v206, %v205
  %v222 = vpack.c.b16 %v208, %v207
  %v223 = vpack.c.b16 %v210, %v209
  %v224 = vpack.c.b16 %v212, %v211
  %v225 = vpack.c.b16 %v214, %v213
  %v226 = vpack.c.b16 %v216, %v215
  %v227 = vpack.c.b16 %v218, %v217
  %v228 = vpack.c.b16 %v220, %v219
  %237 = vmatprep.subr.bf16.mxu0 0
  %238 = vmatpush1.bf16.msra.mxu0 %v228
  %239 = vmatprep.subr.bf16.mxu0 0
  %240 = vmatpush1.bf16.msra.mxu0 %v227
  %241 = vmatprep.subr.bf16.mxu0 0
  %242 = vmatpush1.bf16.msra.mxu0 %v226
  %243 = vmatprep.subr.bf16.mxu0 0
  %244 = vmatpush1.bf16.msra.mxu0 %v225
  %245 = vmatprep.subr.bf16.mxu0 0
  %246 = vmatpush1.bf16.msra.mxu0 %v224
  %247 = vmatprep.subr.bf16.mxu0 0
  %248 = vmatpush1.bf16.msra.mxu0 %v223
  %249 = vmatprep.subr.bf16.mxu0 0
  %250 = vmatpush1.bf16.msra.mxu0 %v222
  %251 = vmatprep.subr.bf16.mxu0 0
  %252 = vmatpush1.bf16.msra.mxu0 %v221
  %253 = vmatprep.subr.bf16.mxu0 0
  %254 = vmatpush2.bf16.msra.mxu0 0
  %255 = vmatprep.subr.bf16.mxu0 0
  %256 = vmatpush2.bf16.msra.mxu0 0
  %257 = vmatprep.subr.bf16.mxu0 0
  %258 = vmatpush2.bf16.msra.mxu0 0
  %259 = vmatprep.subr.bf16.mxu0 0
  %260 = vmatpush2.bf16.msra.mxu0 0
  %261 = vmatprep.subr.bf16.mxu0 0
  %262 = vmatpush2.bf16.msra.mxu0 0
  %263 = vmatprep.subr.bf16.mxu0 0
  %264 = vmatpush2.bf16.msra.mxu0 0
  %265 = vmatprep.subr.bf16.mxu0 0
  %266 = vmatpush2.bf16.msra.mxu0 0
  %267 = vmatprep.subr.bf16.mxu0 0
  %268 = vmatpush2.bf16.msra.mxu0 0
  %269 = vmatprep.mubr.bf16.mxu0 0
  %270 = vmatmul.mubr.bf16.gmra.mxu0 %v165
  %v271 = vpop.f32.mrf.mxu0
  %v272 = vadd.f32 %v187, %v271
  %v273 = vpop.f32.mrf.mxu0
  %v274 = vpop.f32.mrf.mxu0
  %v275 = vpop.f32.mrf.mxu0
  %276 = vdwg.mxu0
  %v277 = vmul.f32 %v272, 0.5
  %v278 = vmul.f32 %v272, 0.70710677
  %vm279 = vcmp.ge.f32.partialorder %v278, 0.0
  %v280 = vsel %vm279, 1.0, -1.0
  %v281 = vand.u32 2147483647, %v278
  %v282 = vmul.f32 %v281, 0.3275911
  %v283 = vadd.f32 %v282, 1.0
  %v284 = vrcp.pop %v283
  %v285 = vmul.f32 %v284, 1.0614054
  %v286 = vadd.f32 %v285, -1.4531521
  %v287 = vmul.f32 %v286, %v284
  %v288 = vadd.f32 %v287, 1.4214138
  %v289 = vmul.f32 %v288, %v284
  %v290 = vadd.f32 %v289, -0.28449672
  %v291 = vmul.f32 %v290, %v284
  %v292 = vadd.f32 %v291, 0.2548296
  %v293 = vmul.f32 %v292, %v284
  %v294 = vsub.f32 0.0, %v281
  %v295 = vmul.f32 %v294, %v281
  %v296 = vmul.f32 %v295, 1.442695
  %v297 = vpow.pop %v296
  %v298 = vmul.f32 %v293, %v297
  %v299 = vsub.f32 1.0, %v298
  %v300 = vmul.f32 %v280, %v299
  %v301 = vadd.f32 %v300, 1.0
  %v302 = vmul.f32 %v277, %v301
  %v303 = vpack.c.bf16 %v302, %v302
  %v304 = vld [vmem:[%s5] sm:$0xf]
  %v305 = vld [vmem:[%s5 + $0x4] sm:$0xf]
  %v306 = vld [vmem:[%s5 + $0x8] sm:$0xf]
  %v307 = vld [vmem:[%s5 + $0xc] sm:$0xf]
  %v308 = vld [vmem:[%s5 + $0x10] sm:$0xf]
  %v309 = vld [vmem:[%s5 + $0x14] sm:$0xf]
  %v310 = vld [vmem:[%s5 + $0x18] sm:$0xf]
  %v311 = vld [vmem:[%s5 + $0x1c] sm:$0xf]
  %v312 = vld [vmem:[%s5 + $0x20] sm:$0xf]
  %v313 = vld [vmem:[%s5 + $0x24] sm:$0xf]
  %v314 = vld [vmem:[%s5 + $0x28] sm:$0xf]
  %v315 = vld [vmem:[%s5 + $0x2c] sm:$0xf]
  %v316 = vld [vmem:[%s5 + $0x30] sm:$0xf]
  %v317 = vld [vmem:[%s5 + $0x34] sm:$0xf]
  %v318 = vld [vmem:[%s5 + $0x38] sm:$0xf]
  %v319 = vld [vmem:[%s5 + $0x3c] sm:$0xf]
  %v320 = vld [vmem:[%s6] sm:$0x1]
  %v322 = vlaneseq
  %v323 = vshrl.u32 %v322, 7
  %v324 = vsub.s32 0, %v323
  %v325 = vrot.slane %v320, %v324
  %v343 = vunpack.c.l.b16 %v304
  %v344 = vunpack.c.l.b16 %v305
  %v345 = vunpack.c.l.b16 %v306
  %v346 = vunpack.c.l.b16 %v307
  %v347 = vunpack.c.l.b16 %v308
  %v348 = vunpack.c.l.b16 %v309
  %v349 = vunpack.c.l.b16 %v310
  %v350 = vunpack.c.l.b16 %v311
  %v351 = vunpack.c.l.b16 %v312
  %v352 = vunpack.c.l.b16 %v313
  %v353 = vunpack.c.l.b16 %v314
  %v354 = vunpack.c.l.b16 %v315
  %v355 = vunpack.c.l.b16 %v316
  %v356 = vunpack.c.l.b16 %v317
  %v357 = vunpack.c.l.b16 %v318
  %v358 = vunpack.c.l.b16 %v319
  %v359 = vpack.c.b16 %v344, %v343
  %v360 = vpack.c.b16 %v346, %v345
  %v361 = vpack.c.b16 %v348, %v347
  %v362 = vpack.c.b16 %v350, %v349
  %v363 = vpack.c.b16 %v352, %v351
  %v364 = vpack.c.b16 %v354, %v353
  %v365 = vpack.c.b16 %v356, %v355
  %v366 = vpack.c.b16 %v358, %v357
  %375 = vmatprep.subr.bf16.mxu0 0
  %376 = vmatpush1.bf16.msra.mxu0 %v366
  %377 = vmatprep.subr.bf16.mxu0 0
  %378 = vmatpush1.bf16.msra.mxu0 %v365
  %379 = vmatprep.subr.bf16.mxu0 0
  %380 = vmatpush1.bf16.msra.mxu0 %v364
  %381 = vmatprep.subr.bf16.mxu0 0
  %382 = vmatpush1.bf16.msra.mxu0 %v363
  %383 = vmatprep.subr.bf16.mxu0 0
  %384 = vmatpush1.bf16.msra.mxu0 %v362
  %385 = vmatprep.subr.bf16.mxu0 0
  %386 = vmatpush1.bf16.msra.mxu0 %v361
  %387 = vmatprep.subr.bf16.mxu0 0
  %388 = vmatpush1.bf16.msra.mxu0 %v360
  %389 = vmatprep.subr.bf16.mxu0 0
  %390 = vmatpush1.bf16.msra.mxu0 %v359
  %391 = vmatprep.subr.bf16.mxu0 0
  %392 = vmatpush2.bf16.msra.mxu0 0
  %393 = vmatprep.subr.bf16.mxu0 0
  %394 = vmatpush2.bf16.msra.mxu0 0
  %395 = vmatprep.subr.bf16.mxu0 0
  %396 = vmatpush2.bf16.msra.mxu0 0
  %397 = vmatprep.subr.bf16.mxu0 0
  %398 = vmatpush2.bf16.msra.mxu0 0
  %399 = vmatprep.subr.bf16.mxu0 0
  %400 = vmatpush2.bf16.msra.mxu0 0
  %401 = vmatprep.subr.bf16.mxu0 0
  %402 = vmatpush2.bf16.msra.mxu0 0
  %403 = vmatprep.subr.bf16.mxu0 0
  %404 = vmatpush2.bf16.msra.mxu0 0
  %405 = vmatprep.subr.bf16.mxu0 0
  %406 = vmatpush2.bf16.msra.mxu0 0
  %407 = vmatprep.mubr.bf16.mxu0 0
  %408 = vmatmul.mubr.bf16.gmra.mxu0 %v303
  %v409 = vpop.f32.mrf.mxu0
  %v410 = vadd.f32 %v325, %v409
  %v411 = vpop.f32.mrf.mxu0
  %v412 = vpop.f32.mrf.mxu0
  %v413 = vpop.f32.mrf.mxu0
  %414 = vdwg.mxu0
  %v415 = vsub.f32 0.0, %v410
  %v416 = vmul.f32 %v415, 1.442695
  %v417 = vpow.pop %v416
  %v418 = vadd.f32 %v417, 1.0
  %v419 = vrcp.pop %v418
  %420 = vst [vmem:[%s7] sm:$0xff] %v419
  // Predicated region
  $region30: #{mlp_forward.1} parent=0 // pred_check
    _
  $region31: #{mlp_forward.1} parent=0 // pred_check_branch
    %422 = sbr.rel (0) target = $region33
  $region32: #{mlp_forward.1} parent=0 // pred_region
    _
  $region33: #{mlp_forward.1} parent=0 // pred_fallthru
    _
  // Predicated region
  $region34: #{mlp_forward.1} parent=0 // pred_check
    _
  $region35: #{mlp_forward.1} parent=0 // pred_check_branch
    %424 = sbr.rel (0) target = $region37
  $region36: #{mlp_forward.1} parent=0 // pred_region
    _
  $region37: #{mlp_forward.1} parent=0 // pred_fallthru
    _

</llo_original>
